<compile_context>
chip_gen: v5e
topology: v5e:2x2
jax: 0.10.0
libtpu: 0.0.40
codegen_flags: <defaults>
</compile_context>

<pallas_src>
import functools

import jax
import jax.numpy as jnp
from jax import lax
from jax.experimental import pallas as pl
from jax.experimental.pallas import tpu as pltpu

MIN_VALUE = 0.1            # deterministic "parameter" of the transform
SOFTPLUS_THRESHOLD = 20.0  # matches torch.nn.functional.softplus default threshold

_TARGET_TILE_BYTES = 2 * 1024 * 1024   # ~2 MiB/tile -> 8 MiB double-buffered in+out
_PALLAS_MIN_ELEMENTS = 1 << 15         # below this, a fused XLA elementwise op wins


def _softplus_kernel(x_ref, o_ref):
    """Elementwise softplus(x) + MIN_VALUE on one (b_block, c_block, H, W) tile.

    x_ref and o_ref alias the same HBM buffer (input_output_aliases), so this
    reads a tile, transforms it, and writes it straight back in place.
    """
    x = x_ref[...]
    # Numerically stable softplus matching torch.nn.functional.softplus
    # (beta=1, threshold=20): log1p(exp(x)) for x <= 20, else identity.
    # TODO(synk): if v7x profiling shows the single EUP is the saturated slot,
    #             do exp/log1p in bf16 and add MIN_VALUE in f32.
    sp = jnp.log1p(jnp.exp(jnp.minimum(x, SOFTPLUS_THRESHOLD)))
    o_ref[...] = jnp.where(x > SOFTPLUS_THRESHOLD, x, sp) + MIN_VALUE


def _transform_pallas(x, half):
    """In-place softplus over the precision channels of an NCHW buffer."""
    B, C, H, W = x.shape
    n_prec = C - half

    # Channel tiling: one block covering all precision channels when the
    # channel offset `half` is block-aligned (always true for even C);
    # otherwise one channel per grid step (handles odd C).
    if half % n_prec == 0:
        c_block, c_grid, c_base = n_prec, 1, half // n_prec
    else:
        c_block, c_grid, c_base = 1, n_prec, half

    # Batch tiling: largest divisor of B whose tile stays under the target.
    # (B % b_block == 0 keeps every written block fully in-bounds, which is
    # the safe thing to do for an aliased in-place output.)
    itemsize = x.dtype.itemsize
    bytes_per_batch_row = max(c_block * H * W * itemsize, 1)
    max_b = max(1, min(B, _TARGET_TILE_BYTES // bytes_per_batch_row))
    b_block = 1
    for cand in range(max_b, 0, -1):
        if B % cand == 0:
            b_block = cand
            break

    grid = (B // b_block, c_grid)
    # Last two block dims equal the full array dims (H, W) -> valid for any
    # spatial size under the (8,128) rule.
    block = (b_block, c_block, H, W)
    spec = pl.BlockSpec(block, lambda b, c: (b, c_base + c, 0, 0))

    return pl.pallas_call(
        _softplus_kernel,
        out_shape=jax.ShapeDtypeStruct(x.shape, x.dtype),
        grid=grid,
        in_specs=[spec],
        out_specs=spec,
        input_output_aliases={0: 0},   # write transformed tiles back in place;
                                       # mean channels are never touched.
        compiler_params=pltpu.CompilerParams(
            dimension_semantics=("parallel", "parallel")),  # shard across TCs
    )(x)


def _transform_xla(x, half):
    """Fast path for tiny inputs: one fused XLA elementwise op."""
    prec = jax.nn.softplus(x[:, half:]) + MIN_VALUE
    return lax.dynamic_update_slice(x, prec.astype(x.dtype), (0, half, 0, 0))


def _transform_impl(x, *, force_pallas):
    """gz21 Transform forward pass (NCHW, float32).

    Mean channels (first C//2) pass through unchanged; precision channels
    (C//2:) get softplus(x) + MIN_VALUE.  The input buffer is donated and the
    transform is applied in place (callers must not reuse `x` afterwards).
    """
    B, C, H, W = x.shape
    half = C // 2
    n_prec = C - half
    if not force_pallas and (B * n_prec * H * W) < _PALLAS_MIN_ELEMENTS:
        return _transform_xla(x, half)
    return _transform_pallas(x, half)


transform_forward = jax.jit(
    functools.partial(_transform_impl, force_pallas=False), donate_argnums=(0,))
transform_forward_pallas = jax.jit(
    functools.partial(_transform_impl, force_pallas=True), donate_argnums=(0,))


def _reference(x):
    """Pure-JAX reference for correctness check."""
    C = x.shape[1]
    mean = x[:, : C // 2]
    prec = jax.nn.softplus(x[:, C // 2:]) + MIN_VALUE
    return jnp.concatenate([mean, prec], axis=1)


if __name__ == "__main__":
    key = jax.random.PRNGKey(0)
    # small shapes consistent with the module's NCHW conv-style inputs
    B, C, H, W = 2, 4, 16, 16
    x = jax.random.normal(key, (B, C, H, W), dtype=jnp.float32) * 3.0

    ref = jax.block_until_ready(_reference(x))

    # Pallas path (forced, so the kernel actually runs at this small size).
    # Inputs are donated, so pass fresh copies and keep `x` for the reference.
    out_pallas = jax.block_until_ready(transform_forward_pallas(jnp.copy(x)))
    assert out_pallas.shape == (B, C, H, W)
    assert jnp.allclose(out_pallas, ref, atol=1e-5, rtol=1e-5), \
        "pallas path mismatch vs reference"

    # Dispatching entry point (takes the fused-XLA fast path at this size).
    out = jax.block_until_ready(transform_forward(jnp.copy(x)))
    assert jnp.allclose(out, ref, atol=1e-5, rtol=1e-5), \
        "dispatch path mismatch vs reference"

    print("KERNEL_OK")
</pallas_src>

<mosaic_0001>
module attributes {stable_mosaic.version = 11 : i64} {
  func.func @_softplus_kernel(%arg0: i32, %arg1: i32, %arg2: memref<2x2x16x16xf32, #tpu.memory_space<vmem>>, %arg3: memref<2x2x16x16xf32, #tpu.memory_space<vmem>>) attributes {dimension_semantics = [#tpu.dimension_semantics<parallel>, #tpu.dimension_semantics<parallel>], iteration_bounds = array<i64: 1, 1>, scalar_prefetch = 0 : i64, scratch_operands = 0 : i64, tpu.core_type = #tpu.core_type<tc>, window_params = [{transform_indices = @transform_0, window_bounds = array<i64: 2, 2, 16, 16>}, {transform_indices = @transform_1, window_bounds = array<i64: 2, 2, 16, 16>}]} {
    %c0 = arith.constant 0 : index
    %c0_0 = arith.constant 0 : index
    %c0_1 = arith.constant 0 : index
    %c0_2 = arith.constant 0 : index
    %0 = vector.load %arg2[%c0, %c0_0, %c0_1, %c0_2] : memref<2x2x16x16xf32, #tpu.memory_space<vmem>>, vector<2x2x16x16xf32>
    %cst = arith.constant 2.000000e+01 : f32
    %1 = vector.broadcast %cst : f32 to vector<2x2x16x16xf32>
    %2 = arith.minimumf %0, %1 : vector<2x2x16x16xf32>
    %3 = math.exp %2 : vector<2x2x16x16xf32>
    %4 = math.log1p %3 : vector<2x2x16x16xf32>
    %cst_3 = arith.constant 2.000000e+01 : f32
    %5 = vector.broadcast %cst_3 : f32 to vector<2x2x16x16xf32>
    %6 = arith.cmpf ogt, %0, %5 : vector<2x2x16x16xf32>
    %7 = arith.select %6, %0, %4 : vector<2x2x16x16xi1>, vector<2x2x16x16xf32>
    %cst_4 = arith.constant 1.000000e-01 : f32
    %8 = vector.broadcast %cst_4 : f32 to vector<2x2x16x16xf32>
    %9 = arith.addf %7, %8 : vector<2x2x16x16xf32>
    %c0_5 = arith.constant 0 : index
    %c0_6 = arith.constant 0 : index
    %c0_7 = arith.constant 0 : index
    %c0_8 = arith.constant 0 : index
    %10 = vector.load %arg3[%c0_5, %c0_6, %c0_7, %c0_8] : memref<2x2x16x16xf32, #tpu.memory_space<vmem>>, vector<2x2x16x16xf32>
    tpu.vector_store %arg3[%c0_5, %c0_6, %c0_7, %c0_8], %9 {strides = array<i32>} : memref<2x2x16x16xf32, #tpu.memory_space<vmem>>, vector<2x2x16x16xf32>,
    return
  }
  func.func @transform_0(%arg0: i32, %arg1: i32) -> (i32, i32, i32, i32) {
    %c1_i32 = arith.constant 1 : i32
    %0 = arith.addi %c1_i32, %arg1 : i32
    %c0_i32 = arith.constant 0 : i32
    %c0_i32_0 = arith.constant 0 : i32
    %c0_i32_1 = arith.constant 0 : i32
    return %arg0, %0, %c0_i32, %c0_i32_0 : i32, i32, i32, i32
  }
  func.func @transform_1(%arg0: i32, %arg1: i32) -> (i32, i32, i32, i32) {
    %c1_i32 = arith.constant 1 : i32
    %0 = arith.addi %c1_i32, %arg1 : i32
    %c0_i32 = arith.constant 0 : i32
    %c0_i32_0 = arith.constant 0 : i32
    %c0_i32_1 = arith.constant 0 : i32
    return %arg0, %0, %c0_i32, %c0_i32_0 : i32, i32, i32, i32
  }
}

</mosaic_0001>

<llo_original>
// kernel: _transform_impl.1
$region0: #{_transform_impl.1}
  #allocation0 [shape = 'u32[]', space=smem, size = 0x4, offset = 0x4, fixed_abs, tag = 'smem constant byte address 0x4 - core index']
  #allocation1 [shape = 'u32[72,128]{1,0:T(1,128)}', space=vmem, size = 0x9000, scoped, tag = 'internal scratch']
  #allocation6 [shape = 's32[]', space=sflag, size = 0x4, offset = 0, fixed_abs, tag = 'sflag constant byte address 0x0 - dummy sync flag']
  #allocation8 [shape = 's32[]', space=sflag, size = 0x4, offset = 0, fixed_abs, tag = 'sflag constant byte address 0x0 - dummy sync flag']
  %s0 = inlined_call_operand.hbm [shape: f32[2,4,16,16], index: 0, kind: input, shape index: {}, may-alias: {0,1}]
  %s1 = inlined_call_operand.hbm [shape: f32[2,4,16,16], index: 1, kind: output, shape index: {}, may-alias: {0,1}]
  %s2 = sld [smem:[#allocation0]]
  $region18: #{_transform_impl.1} parent=0
    _
  %s4 = ssub.s32 1, %s2
  %s5 = scalar_select 0, %s4, %s2
  $region1: #{_transform_impl.1} parent=0
    #allocation2 [shape = 'u8[32768]{0}', space=vmem, size = 0x8000, scoped, tag = 'input window, operand 0, single buffered']
    #allocation3 [shape = 's32[1]{0}', space=sflag, size = 0x4, scoped, tag = 'scoped memory for _transform_impl.1']
    #allocation4 [shape = 's32[1]{0}', space=sflag, size = 0x4, scoped, tag = 'scoped memory for _transform_impl.1']
    #allocation5 [shape = 'u8[32768]{0}', space=vmem, size = 0x8000, scoped, tag = 'output window, operand 0, single buffered']
    %6 = vsyncpa [#allocation3], 0
    %7 = vsyncpa [#allocation4], 0
    // Predicated region
    $region2: #{_transform_impl.1} parent=1 // pred_check
      _
    $region3: #{_transform_impl.1} parent=1 // pred_check_branch
      %9 = sbr.rel (0) target = $region5
    $region4: #{_transform_impl.1} parent=1 // pred_region
      #allocation7 [shape = 'u32[6]{0}', space=smem, size = 0x18, scoped, tag = 'DMA stride descriptor']
      %s10 = sadd.s32 0, 1
      %s11 = smul.u32 2, %s10
      %13 = vsyncadd [#allocation3], 0
      %s14 = smul.addr %s11, 2
      %s15 = smul.addr %s14, 8
      %s16 = scalar_lea.hbm %s0, %s15
      %s18 = sshll.u32 1, 14
      %s19 = sxor.u32 4294967295, %s18
      %s21 = sld [smem:[#allocation0]]
      %s22 = sadd.s32 2, %s21
      %s24 = sshll.u32 7, 26
      %s25 = sxor.u32 4294967295, %s24
      %s26 = sand.u32 0, %s25
      %s27 = sshll.u32 %s22, 26
      %s28 = sor.u32 %s26, %s27
      %s29 = sshll.u32 %s16, 4
      %s30 = int_to_ptr.hbm [resolvable:$true] %s29
      %s31 = sshll.u32 [#allocation2], 4
      %s32 = int_to_ptr.vmem [resolvable:$true] %s31
      %38 = sst [smem:[#allocation7]] 1024
      %s39 = scalar_lea.smem [#allocation7], 1
      %40 = sst [smem:[%s39]] 512
      %s41 = scalar_lea.smem [#allocation7], 2
      %42 = sst [smem:[%s41]] 4
      %s43 = scalar_lea.smem [#allocation7], 3
      %44 = sst [smem:[%s43]] 128
      %s45 = scalar_lea.smem [#allocation7], 4
      %46 = sst [smem:[%s45]] 128
      %s47 = scalar_lea.smem [#allocation7], 5
      %48 = sst [smem:[%s47]] 8
      %50 = dma.general %s30, 1024, %s32, [#allocation3], [#allocation6], [#allocation7], %s28, 0
    $region5: #{_transform_impl.1} parent=1 // pred_fallthru
      _
    // Predicated region
    $region6: #{_transform_impl.1} parent=1 // pred_check
      _
    $region7: #{_transform_impl.1} parent=1 // pred_check_branch
      %52 = sbr.rel (0) target = $region9
    $region8: #{_transform_impl.1} parent=1 // pred_region
      %54 = dma.done [#allocation3], 1024
    $region9: #{_transform_impl.1} parent=1 // pred_fallthru
      _
    %s55 = sadd.s32 0, 1
    %s56 = smul.u32 2, %s55
    %s57 = sadd.s32 0, 1
    %s58 = smul.u32 2, %s57
    %v59 = vld [vmem:[#allocation2] sm:$0xff]
    %v60 = vld [vmem:[#allocation2 + $0x8] sm:$0xff]
    %v61 = vld [vmem:[#allocation2 + $0x10] sm:$0xff]
    %v62 = vld [vmem:[#allocation2 + $0x18] sm:$0xff]
    %v63 = vld [vmem:[#allocation2 + $0x20] sm:$0xff]
    %v64 = vld [vmem:[#allocation2 + $0x28] sm:$0xff]
    %v65 = vld [vmem:[#allocation2 + $0x30] sm:$0xff]
    %v66 = vld [vmem:[#allocation2 + $0x38] sm:$0xff]
    %v67 = vmin.f32 %v59, 20.0
    %v68 = vmin.f32 %v60, 20.0
    %v69 = vmin.f32 %v61, 20.0
    %v70 = vmin.f32 %v62, 20.0
    %v71 = vmin.f32 %v63, 20.0
    %v72 = vmin.f32 %v64, 20.0
    %v73 = vmin.f32 %v65, 20.0
    %v74 = vmin.f32 %v66, 20.0
    %v75 = vmul.f32 %v67, 1.442695
    %v76 = vpow.pop %v75
    %v77 = vmul.f32 %v68, 1.442695
    %v78 = vpow.pop %v77
    %v79 = vmul.f32 %v69, 1.442695
    %v80 = vpow.pop %v79
    %v81 = vmul.f32 %v70, 1.442695
    %v82 = vpow.pop %v81
    %v83 = vmul.f32 %v71, 1.442695
    %v84 = vpow.pop %v83
    %v85 = vmul.f32 %v72, 1.442695
    %v86 = vpow.pop %v85
    %v87 = vmul.f32 %v73, 1.442695
    %v88 = vpow.pop %v87
    %v89 = vmul.f32 %v74, 1.442695
    %v90 = vpow.pop %v89
    %v91 = vadd.f32 %v76, 1.0
    %v92 = vlog2.pop %v91
    %v93 = vmul.f32 %v92, 0.6931472
    %v94 = vmul.f32 -0.5, %v76
    %v95 = vadd.f32 %v94, 1.0
    %v96 = vmul.f32 %v95, %v76
    %v97 = vand.u32 2147483647, %v76
    %vm98 = vcmp.lt.f32.partialorder %v97, 0.0004427343
    %v99 = vsel %vm98, %v96, %v93
    %v100 = vadd.f32 %v78, 1.0
    %v101 = vlog2.pop %v100
    %v102 = vmul.f32 %v101, 0.6931472
    %v103 = vmul.f32 -0.5, %v78
    %v104 = vadd.f32 %v103, 1.0
    %v105 = vmul.f32 %v104, %v78
    %v106 = vand.u32 2147483647, %v78
    %vm107 = vcmp.lt.f32.partialorder %v106, 0.0004427343
    %v108 = vsel %vm107, %v105, %v102
    %v109 = vadd.f32 %v80, 1.0
    %v110 = vlog2.pop %v109
    %v111 = vmul.f32 %v110, 0.6931472
    %v112 = vmul.f32 -0.5, %v80
    %v113 = vadd.f32 %v112, 1.0
    %v114 = vmul.f32 %v113, %v80
    %v115 = vand.u32 2147483647, %v80
    %vm116 = vcmp.lt.f32.partialorder %v115, 0.0004427343
    %v117 = vsel %vm116, %v114, %v111
    %v118 = vadd.f32 %v82, 1.0
    %v119 = vlog2.pop %v118
    %v120 = vmul.f32 %v119, 0.6931472
    %v121 = vmul.f32 -0.5, %v82
    %v122 = vadd.f32 %v121, 1.0
    %v123 = vmul.f32 %v122, %v82
    %v124 = vand.u32 2147483647, %v82
    %vm125 = vcmp.lt.f32.partialorder %v124, 0.0004427343
    %v126 = vsel %vm125, %v123, %v120
    %v127 = vadd.f32 %v84, 1.0
    %v128 = vlog2.pop %v127
    %v129 = vmul.f32 %v128, 0.6931472
    %v130 = vmul.f32 -0.5, %v84
    %v131 = vadd.f32 %v130, 1.0
    %v132 = vmul.f32 %v131, %v84
    %v133 = vand.u32 2147483647, %v84
    %vm134 = vcmp.lt.f32.partialorder %v133, 0.0004427343
    %v135 = vsel %vm134, %v132, %v129
    %v136 = vadd.f32 %v86, 1.0
    %v137 = vlog2.pop %v136
    %v138 = vmul.f32 %v137, 0.6931472
    %v139 = vmul.f32 -0.5, %v86
    %v140 = vadd.f32 %v139, 1.0
    %v141 = vmul.f32 %v140, %v86
    %v142 = vand.u32 2147483647, %v86
    %vm143 = vcmp.lt.f32.partialorder %v142, 0.0004427343
    %v144 = vsel %vm143, %v141, %v138
    %v145 = vadd.f32 %v88, 1.0
    %v146 = vlog2.pop %v145
    %v147 = vmul.f32 %v146, 0.6931472
    %v148 = vmul.f32 -0.5, %v88
    %v149 = vadd.f32 %v148, 1.0
    %v150 = vmul.f32 %v149, %v88
    %v151 = vand.u32 2147483647, %v88
    %vm152 = vcmp.lt.f32.partialorder %v151, 0.0004427343
    %v153 = vsel %vm152, %v150, %v147
    %v154 = vadd.f32 %v90, 1.0
    %v155 = vlog2.pop %v154
    %v156 = vmul.f32 %v155, 0.6931472
    %v157 = vmul.f32 -0.5, %v90
    %v158 = vadd.f32 %v157, 1.0
    %v159 = vmul.f32 %v158, %v90
    %v160 = vand.u32 2147483647, %v90
    %vm161 = vcmp.lt.f32.partialorder %v160, 0.0004427343
    %v162 = vsel %vm161, %v159, %v156
    %vm163 = vcmp.gt.f32.partialorder %v59, 20.0
    %vm164 = vcmp.gt.f32.partialorder %v60, 20.0
    %vm165 = vcmp.gt.f32.partialorder %v61, 20.0
    %vm166 = vcmp.gt.f32.partialorder %v62, 20.0
    %vm167 = vcmp.gt.f32.partialorder %v63, 20.0
    %vm168 = vcmp.gt.f32.partialorder %v64, 20.0
    %vm169 = vcmp.gt.f32.partialorder %v65, 20.0
    %vm170 = vcmp.gt.f32.partialorder %v66, 20.0
    %v171 = vsel %vm163, %v59, %v99
    %v172 = vsel %vm164, %v60, %v108
    %v173 = vsel %vm165, %v61, %v117
    %v174 = vsel %vm166, %v62, %v126
    %v175 = vsel %vm167, %v63, %v135
    %v176 = vsel %vm168, %v64, %v144
    %v177 = vsel %vm169, %v65, %v153
    %v178 = vsel %vm170, %v66, %v162
    %v179 = vadd.f32 %v171, 0.1
    %v180 = vadd.f32 %v172, 0.1
    %v181 = vadd.f32 %v173, 0.1
    %v182 = vadd.f32 %v174, 0.1
    %v183 = vadd.f32 %v175, 0.1
    %v184 = vadd.f32 %v176, 0.1
    %v185 = vadd.f32 %v177, 0.1
    %v186 = vadd.f32 %v178, 0.1
    %vm187 = vcmask 130048
    %188 = vst.msk [vmem:[#allocation5] sm:$0xff] %vm187, %v179
    %189 = vst.msk [vmem:[#allocation5 + $0x8] sm:$0xff] %vm187, %v180
    %190 = vst.msk [vmem:[#allocation5 + $0x10] sm:$0xff] %vm187, %v181
    %191 = vst.msk [vmem:[#allocation5 + $0x18] sm:$0xff] %vm187, %v182
    %192 = vst.msk [vmem:[#allocation5 + $0x20] sm:$0xff] %vm187, %v183
    %193 = vst.msk [vmem:[#allocation5 + $0x28] sm:$0xff] %vm187, %v184
    %194 = vst.msk [vmem:[#allocation5 + $0x30] sm:$0xff] %vm187, %v185
    %195 = vst.msk [vmem:[#allocation5 + $0x38] sm:$0xff] %vm187, %v186
    // Predicated region
    $region10: #{_transform_impl.1} parent=1 // pred_check
      _
    $region11: #{_transform_impl.1} parent=1 // pred_check_branch
      %197 = sbr.rel (0) target = $region13
    $region12: #{_transform_impl.1} parent=1 // pred_region
      #allocation9 [shape = 'u32[6]{0}', space=smem, size = 0x18, scoped, tag = 'DMA stride descriptor']
      %s198 = sadd.s32 0, 1
      %s199 = smul.u32 2, %s198
      %201 = vsyncadd [#allocation4], 0
      %s202 = smul.addr %s199, 2
      %s203 = smul.addr %s202, 8
      %s204 = scalar_lea.hbm %s1, %s203
      %s206 = sshll.u32 1, 14
      %s207 = sxor.u32 4294967295, %s206
      %s210 = sshll.u32 7, 18
      %s211 = sxor.u32 4294967295, %s210
      %s212 = sand.u32 0, %s211
      %s214 = sor.u32 %s212, 0
      %s215 = sshll.u32 [#allocation5], 4
      %s216 = int_to_ptr.vmem [resolvable:$true] %s215
      %s217 = sshll.u32 %s204, 4
      %s218 = int_to_ptr.hbm [resolvable:$true] %s217
      %224 = sst [smem:[#allocation9]] 512
      %s225 = scalar_lea.smem [#allocation9], 1
      %226 = sst [smem:[%s225]] 1024
      %s227 = scalar_lea.smem [#allocation9], 2
      %228 = sst [smem:[%s227]] 4
      %s229 = scalar_lea.smem [#allocation9], 3
      %230 = sst [smem:[%s229]] 128
      %s231 = scalar_lea.smem [#allocation9], 4
      %232 = sst [smem:[%s231]] 128
      %s233 = scalar_lea.smem [#allocation9], 5
      %234 = sst [smem:[%s233]] 8
      %236 = dma.general %s216, 1024, %s218, [#allocation4], [#allocation8], [#allocation9], %s214, 0
    $region13: #{_transform_impl.1} parent=1 // pred_fallthru
      _
    // Predicated region
    $region14: #{_transform_impl.1} parent=1 // pred_check
      _
    $region15: #{_transform_impl.1} parent=1 // pred_check_branch
      %238 = sbr.rel (0) target = $region17
    $region16: #{_transform_impl.1} parent=1 // pred_region
      %240 = dma.done [#allocation4], 1024
    $region17: #{_transform_impl.1} parent=1 // pred_fallthru
      _
    %241 = vsyncpa [#allocation3], 1
    %242 = vsyncpa [#allocation4], 1

</llo_original>
